<compile_context>
chip_gen: v6e
topology: v6e:2x2x1
jax: 0.10.0
libtpu: 0.0.40
codegen_flags: <defaults>
</compile_context>

<pallas_src>
import functools

import jax
import jax.numpy as jnp
from jax.experimental import pallas as pl
from jax.experimental.pallas import tpu as pltpu


def _round_up(n, m):
    return ((n + m - 1) // m) * m


def _qnet_kernel(x_ref, w1_ref, b1_ref, w2_ref, b2_ref, w3_ref, b3_ref, o_ref):
    x = x_ref[...]                                                   # (TB, S) f32

    # fc1 + ReLU (MXU, f32 accumulate; K is tiny but the MXU has huge slack)
    h1 = jnp.dot(x, w1_ref[...], preferred_element_type=jnp.float32)
    h1 = jnp.maximum(h1 + b1_ref[...], 0.0)                          # (TB, Hp)

    # fc2 + ReLU
    h2 = jnp.dot(h1, w2_ref[...], preferred_element_type=jnp.float32)
    h2 = jnp.maximum(h2 + b2_ref[...], 0.0)                          # (TB, Hp)

    # fc3 (no activation)
    out = jnp.dot(h2, w3_ref[...], preferred_element_type=jnp.float32)
    o_ref[...] = (out + b3_ref[...]).astype(o_ref.dtype)             # (TB, Np)


def _resident(a):
    """Full-array block with a constant index_map -> stays VMEM-resident."""
    return pl.BlockSpec(a.shape, lambda i: (0,) * a.ndim)


@functools.partial(jax.jit, static_argnames=("block_b", "min_steps"))
def qnetwork_forward(x, params, *, block_b=1024, min_steps=1):
    """x: [B, state_size] f32. params: dict(w1,b1,w2,b2,w3,b3); weights stored
    as [in_features, out_features] (transposed vs. PyTorch's [out, in]).

    block_b:   max rows per batch tile (rounded to a multiple of 8).
    min_steps: force at least this many grid steps (set 2 on v7x for large
               replay batches so the two TensorCores split the batch axis;
               a no-op lever on v5e/v6e which have a single TC).
    """
    w1, b1, w2, b2, w3, b3 = (params["w1"], params["b1"], params["w2"],
                              params["b2"], params["w3"], params["b3"])
    B, state_size = x.shape
    hidden = w1.shape[1]
    action_size = w3.shape[1]

    # Lane-dense hidden and output dims: zero-pad hidden -> multiple of 128 and
    # fc3 columns -> multiple of 128. Padded hidden columns stay exactly zero
    # through ReLU (zero weights + zero bias), so valid outputs are unchanged.
    h_pad = _round_up(hidden, 128)
    n_pad = _round_up(action_size, 128)
    if h_pad != hidden:
        w1 = jnp.pad(w1, ((0, 0), (0, h_pad - hidden)))
        b1 = jnp.pad(b1, ((0, 0), (0, h_pad - hidden)))
        w2 = jnp.pad(w2, ((0, h_pad - hidden), (0, h_pad - hidden)))
        b2 = jnp.pad(b2, ((0, 0), (0, h_pad - hidden)))
        w3 = jnp.pad(w3, ((0, h_pad - hidden), (0, 0)))
    if n_pad != action_size:
        w3 = jnp.pad(w3, ((0, 0), (0, n_pad - action_size)))
        b3 = jnp.pad(b3, ((0, 0), (0, n_pad - action_size)))

    # Batch tile: multiple of 8 (f32 sublane), as large as possible so small
    # batches are a single grid step. No jnp.pad(x): Pallas bounds the ragged
    # last block's DMAs, and garbage rows in the padded tile never mix across
    # rows (each output row depends only on its own input row).
    b_eff = _round_up(max(B, 1), 8)
    steps = max(int(min_steps), 1)
    tb = min(_round_up(block_b, 8), _round_up(pl.cdiv(b_eff, steps), 8))
    tb = max(tb, 8)
    grid = (pl.cdiv(B, tb),)

    out = pl.pallas_call(
        _qnet_kernel,
        out_shape=jax.ShapeDtypeStruct((B, n_pad), jnp.float32),
        grid=grid,
        in_specs=[
            pl.BlockSpec((tb, state_size), lambda i: (i, 0)),   # x: batch-tiled
            _resident(w1), _resident(b1),
            _resident(w2), _resident(b2),
            _resident(w3), _resident(b3),
        ],
        out_specs=pl.BlockSpec((tb, n_pad), lambda i: (i, 0)),
        compiler_params=pltpu.CompilerParams(
            dimension_semantics=("parallel",)),
    )(x, w1, b1, w2, b2, w3, b3)

    return out[:, :action_size]


def init_params(key, state_size, action_size, hidden_size=64):
    """PyTorch nn.Linear default init: U(-1/sqrt(fan_in), 1/sqrt(fan_in)).
    Weights stored as [in, out] (pre-transposed vs. PyTorch)."""
    ks = jax.random.split(key, 6)

    def layer(kw, kb, fan_in, fan_out):
        bound = 1.0 / jnp.sqrt(jnp.float32(fan_in))
        w = jax.random.uniform(kw, (fan_in, fan_out), jnp.float32, -bound, bound)
        b = jax.random.uniform(kb, (1, fan_out), jnp.float32, -bound, bound)
        return w, b

    w1, b1 = layer(ks[0], ks[1], state_size, hidden_size)
    w2, b2 = layer(ks[2], ks[3], hidden_size, hidden_size)
    w3, b3 = layer(ks[4], ks[5], hidden_size, action_size)
    return dict(w1=w1, b1=b1, w2=w2, b2=b2, w3=w3, b3=b3)


def reference_forward(x, p):
    h1 = jnp.maximum(x @ p["w1"] + p["b1"], 0.0)
    h2 = jnp.maximum(h1 @ p["w2"] + p["b2"], 0.0)
    return h2 @ p["w3"] + p["b3"]


if __name__ == "__main__":
    # UnbalancedDisk observation_space has shape (2,) -> state_size = 2.
    state_size = 2
    action_size = 5
    hidden_size = 64

    key = jax.random.PRNGKey(0)
    kx_small, kx_big, kp = jax.random.split(key, 3)
    params = init_params(kp, state_size, action_size, hidden_size)

    # Small batch (matches original per-step usage): single grid step.
    x_small = jax.random.normal(kx_small, (2, state_size), jnp.float32)
    out_small = jax.block_until_ready(qnetwork_forward(x_small, params))
    ref_small = reference_forward(x_small, params)
    assert out_small.shape == (2, action_size)
    assert jnp.allclose(out_small, ref_small, atol=1e-2, rtol=1e-2), \
        "small-batch mismatch"

    # Replay-buffer style batch, default tiling: one big block, no row padding.
    x_big = jax.random.normal(kx_big, (300, state_size), jnp.float32)
    out_big = jax.block_until_ready(qnetwork_forward(x_big, params))
    ref_big = reference_forward(x_big, params)
    assert out_big.shape == (300, action_size)
    assert jnp.allclose(out_big, ref_big, atol=1e-2, rtol=1e-2), \
        "big-batch mismatch"

    # Multi-step grid with a ragged last block (exercises OOB masking).
    out_multi = jax.block_until_ready(qnetwork_forward(x_big, params, block_b=128))
    assert out_multi.shape == (300, action_size)
    assert jnp.allclose(out_multi, ref_big, atol=1e-2, rtol=1e-2), \
        "multi-step grid mismatch"

    # v7x-style 2-way batch sharding (>=2 parallel grid steps).
    out_2tc = jax.block_until_ready(qnetwork_forward(x_big, params, min_steps=2))
    assert out_2tc.shape == (300, action_size)
    assert jnp.allclose(out_2tc, ref_big, atol=1e-2, rtol=1e-2), \
        "min_steps=2 mismatch"

    print("KERNEL_OK")
</pallas_src>

<mosaic_0001>
module attributes {stable_mosaic.version = 11 : i64} {
  func.func @_qnet_kernel(%arg0: i32, %arg1: memref<8x2xf32, #tpu.memory_space<vmem>>, %arg2: memref<2x128xf32, #tpu.memory_space<vmem>>, %arg3: memref<1x128xf32, #tpu.memory_space<vmem>>, %arg4: memref<128x128xf32, #tpu.memory_space<vmem>>, %arg5: memref<1x128xf32, #tpu.memory_space<vmem>>, %arg6: memref<128x128xf32, #tpu.memory_space<vmem>>, %arg7: memref<1x128xf32, #tpu.memory_space<vmem>>, %arg8: memref<8x128xf32, #tpu.memory_space<vmem>>) attributes {dimension_semantics = [#tpu.dimension_semantics<parallel>], iteration_bounds = array<i64: 1>, scalar_prefetch = 0 : i64, scratch_operands = 0 : i64, tpu.core_type = #tpu.core_type<tc>, window_params = [{transform_indices = @transform_0, window_bounds = array<i64: 8, 2>}, {pipeline_mode = #tpu.pipeline_mode<synchronous>, transform_indices = @transform_1, window_bounds = array<i64: 2, 128>}, {pipeline_mode = #tpu.pipeline_mode<synchronous>, transform_indices = @transform_2, window_bounds = array<i64: 1, 128>}, {pipeline_mode = #tpu.pipeline_mode<synchronous>, transform_indices = @transform_3, window_bounds = array<i64: 128, 128>}, {pipeline_mode = #tpu.pipeline_mode<synchronous>, transform_indices = @transform_4, window_bounds = array<i64: 1, 128>}, {pipeline_mode = #tpu.pipeline_mode<synchronous>, transform_indices = @transform_5, window_bounds = array<i64: 128, 128>}, {pipeline_mode = #tpu.pipeline_mode<synchronous>, transform_indices = @transform_6, window_bounds = array<i64: 1, 128>}, {transform_indices = @transform_7, window_bounds = array<i64: 8, 128>}]} {
    %c0 = arith.constant 0 : index
    %c0_0 = arith.constant 0 : index
    %0 = vector.load %arg1[%c0, %c0_0] : memref<8x2xf32, #tpu.memory_space<vmem>>, vector<8x2xf32>
    %c0_1 = arith.constant 0 : index
    %c0_2 = arith.constant 0 : index
    %1 = vector.load %arg2[%c0_1, %c0_2] : memref<2x128xf32, #tpu.memory_space<vmem>>, vector<2x128xf32>
    %cst = arith.constant dense<0.000000e+00> : vector<8x128xf32>
    %2 = tpu.matmul %0, %1, %cst {dimension_numbers = #tpu.dot_dimension_numbers<[1], [0], [0], [1], [0, 0, 1, 1], [], []>} : vector<8x2xf32>, vector<2x128xf32>, vector<8x128xf32> -> vector<8x128xf32>
    %c0_3 = arith.constant 0 : index
    %c0_4 = arith.constant 0 : index
    %3 = vector.load %arg3[%c0_3, %c0_4] : memref<1x128xf32, #tpu.memory_space<vmem>>, vector<1x128xf32>
    %4 = vector.broadcast %3 : vector<1x128xf32> to vector<8x128xf32>
    %5 = arith.addf %2, %4 : vector<8x128xf32>
    %cst_5 = arith.constant 0.000000e+00 : f32
    %6 = vector.broadcast %cst_5 : f32 to vector<8x128xf32>
    %7 = arith.maximumf %5, %6 : vector<8x128xf32>
    %c0_6 = arith.constant 0 : index
    %c0_7 = arith.constant 0 : index
    %8 = vector.load %arg4[%c0_6, %c0_7] : memref<128x128xf32, #tpu.memory_space<vmem>>, vector<128x128xf32>
    %cst_8 = arith.constant dense<0.000000e+00> : vector<8x128xf32>
    %9 = tpu.matmul %7, %8, %cst_8 {dimension_numbers = #tpu.dot_dimension_numbers<[1], [0], [0], [1], [0, 0, 1, 1], [], []>} : vector<8x128xf32>, vector<128x128xf32>, vector<8x128xf32> -> vector<8x128xf32>
    %c0_9 = arith.constant 0 : index
    %c0_10 = arith.constant 0 : index
    %10 = vector.load %arg5[%c0_9, %c0_10] : memref<1x128xf32, #tpu.memory_space<vmem>>, vector<1x128xf32>
    %11 = vector.broadcast %10 : vector<1x128xf32> to vector<8x128xf32>
    %12 = arith.addf %9, %11 : vector<8x128xf32>
    %cst_11 = arith.constant 0.000000e+00 : f32
    %13 = vector.broadcast %cst_11 : f32 to vector<8x128xf32>
    %14 = arith.maximumf %12, %13 : vector<8x128xf32>
    %c0_12 = arith.constant 0 : index
    %c0_13 = arith.constant 0 : index
    %15 = vector.load %arg6[%c0_12, %c0_13] : memref<128x128xf32, #tpu.memory_space<vmem>>, vector<128x128xf32>
    %cst_14 = arith.constant dense<0.000000e+00> : vector<8x128xf32>
    %16 = tpu.matmul %14, %15, %cst_14 {dimension_numbers = #tpu.dot_dimension_numbers<[1], [0], [0], [1], [0, 0, 1, 1], [], []>} : vector<8x128xf32>, vector<128x128xf32>, vector<8x128xf32> -> vector<8x128xf32>
    %c0_15 = arith.constant 0 : index
    %c0_16 = arith.constant 0 : index
    %17 = vector.load %arg7[%c0_15, %c0_16] : memref<1x128xf32, #tpu.memory_space<vmem>>, vector<1x128xf32>
    %18 = vector.broadcast %17 : vector<1x128xf32> to vector<8x128xf32>
    %19 = arith.addf %16, %18 : vector<8x128xf32>
    %c0_17 = arith.constant 0 : index
    %c0_18 = arith.constant 0 : index
    %20 = vector.load %arg8[%c0_17, %c0_18] : memref<8x128xf32, #tpu.memory_space<vmem>>, vector<8x128xf32>
    tpu.vector_store %arg8[%c0_17, %c0_18], %19 {strides = array<i32>} : memref<8x128xf32, #tpu.memory_space<vmem>>, vector<8x128xf32>,
    return
  }
  func.func @transform_0(%arg0: i32) -> (i32, i32) {
    %c0_i32 = arith.constant 0 : i32
    %c0_i32_0 = arith.constant 0 : i32
    return %arg0, %c0_i32 : i32, i32
  }
  func.func @transform_1(%arg0: i32) -> (i32, i32) {
    %c0_i32 = arith.constant 0 : i32
    %c0_i32_0 = arith.constant 0 : i32
    %c0_i32_1 = arith.constant 0 : i32
    return %c0_i32, %c0_i32_0 : i32, i32
  }
  func.func @transform_2(%arg0: i32) -> (i32, i32) {
    %c0_i32 = arith.constant 0 : i32
    %c0_i32_0 = arith.constant 0 : i32
    %c0_i32_1 = arith.constant 0 : i32
    return %c0_i32, %c0_i32_0 : i32, i32
  }
  func.func @transform_3(%arg0: i32) -> (i32, i32) {
    %c0_i32 = arith.constant 0 : i32
    %c0_i32_0 = arith.constant 0 : i32
    %c0_i32_1 = arith.constant 0 : i32
    return %c0_i32, %c0_i32_0 : i32, i32
  }
  func.func @transform_4(%arg0: i32) -> (i32, i32) {
    %c0_i32 = arith.constant 0 : i32
    %c0_i32_0 = arith.constant 0 : i32
    %c0_i32_1 = arith.constant 0 : i32
    return %c0_i32, %c0_i32_0 : i32, i32
  }
  func.func @transform_5(%arg0: i32) -> (i32, i32) {
    %c0_i32 = arith.constant 0 : i32
    %c0_i32_0 = arith.constant 0 : i32
    %c0_i32_1 = arith.constant 0 : i32
    return %c0_i32, %c0_i32_0 : i32, i32
  }
  func.func @transform_6(%arg0: i32) -> (i32, i32) {
    %c0_i32 = arith.constant 0 : i32
    %c0_i32_0 = arith.constant 0 : i32
    %c0_i32_1 = arith.constant 0 : i32
    return %c0_i32, %c0_i32_0 : i32, i32
  }
  func.func @transform_7(%arg0: i32) -> (i32, i32) {
    %c0_i32 = arith.constant 0 : i32
    %c0_i32_0 = arith.constant 0 : i32
    return %arg0, %c0_i32 : i32, i32
  }
}

</mosaic_0001>

<llo_original>
// kernel: qnetwork_forward.1
$region0: #{qnetwork_forward.1}
  #allocation0 [shape = 'u32[]', space=smem, size = 0x4, offset = 0x4, fixed_abs, tag = 'smem constant byte address 0x4 - core index']
  #allocation1 [shape = 'u32[144,128]{1,0:T(1,128)}', space=vmem, size = 0x12000, scoped, tag = 'internal scratch']
  %s0 = inlined_call_operand.vmem [shape: f32[2,2], index: 0, kind: input, shape index: {}]
  %s1 = inlined_call_operand.vmem [shape: f32[2,128], index: 1, kind: input, shape index: {}]
  %s2 = inlined_call_operand.vmem [shape: f32[1,128], index: 2, kind: input, shape index: {}]
  %s3 = inlined_call_operand.vmem [shape: f32[128,128], index: 3, kind: input, shape index: {}]
  %s4 = inlined_call_operand.vmem [shape: f32[1,128], index: 4, kind: input, shape index: {}]
  %s5 = inlined_call_operand.vmem [shape: f32[128,128], index: 5, kind: input, shape index: {}]
  %s6 = inlined_call_operand.vmem [shape: f32[1,128], index: 6, kind: input, shape index: {}]
  %s7 = inlined_call_operand.hbm [shape: f32[2,128], index: 7, kind: output, shape index: {}]
  %s8 = sld [smem:[#allocation0]]
  $region38: #{qnetwork_forward.1} parent=0
    _
  %s10 = ssub.s32 1, %s8
  %s11 = scalar_select 0, %s10, %s8
  $region1: #{qnetwork_forward.1} parent=0
    #allocation2 [shape = 'u8[4096]{0}', space=vmem, size = 0x1000, scoped, tag = 'output window, operand 0, single buffered']
    #allocation3 [shape = 's32[1]{0}', space=sflag, size = 0x4, scoped, tag = 'scoped memory for qnetwork_forward.1']
    %12 = vsyncpa [#allocation3], 0
    // Predicated region
    $region2: #{qnetwork_forward.1} parent=1 // pred_check
      _
    $region3: #{qnetwork_forward.1} parent=1 // pred_check_branch
      %14 = sbr.rel (0) target = $region5
    $region4: #{qnetwork_forward.1} parent=1 // pred_region
      _
    $region5: #{qnetwork_forward.1} parent=1 // pred_fallthru
      _
    // Predicated region
    $region6: #{qnetwork_forward.1} parent=1 // pred_check
      _
    $region7: #{qnetwork_forward.1} parent=1 // pred_check_branch
      %16 = sbr.rel (0) target = $region9
    $region8: #{qnetwork_forward.1} parent=1 // pred_region
      _
    $region9: #{qnetwork_forward.1} parent=1 // pred_fallthru
      _
    // Predicated region
    $region10: #{qnetwork_forward.1} parent=1 // pred_check
      _
    $region11: #{qnetwork_forward.1} parent=1 // pred_check_branch
      %18 = sbr.rel (0) target = $region13
    $region12: #{qnetwork_forward.1} parent=1 // pred_region
      _
    $region13: #{qnetwork_forward.1} parent=1 // pred_fallthru
      _
    // Predicated region
    $region14: #{qnetwork_forward.1} parent=1 // pred_check
      _
    $region15: #{qnetwork_forward.1} parent=1 // pred_check_branch
      %20 = sbr.rel (0) target = $region17
    $region16: #{qnetwork_forward.1} parent=1 // pred_region
      _
    $region17: #{qnetwork_forward.1} parent=1 // pred_fallthru
      _
    // Predicated region
    $region18: #{qnetwork_forward.1} parent=1 // pred_check
      _
    $region19: #{qnetwork_forward.1} parent=1 // pred_check_branch
      %22 = sbr.rel (0) target = $region21
    $region20: #{qnetwork_forward.1} parent=1 // pred_region
      _
    $region21: #{qnetwork_forward.1} parent=1 // pred_fallthru
      _
    // Predicated region
    $region22: #{qnetwork_forward.1} parent=1 // pred_check
      _
    $region23: #{qnetwork_forward.1} parent=1 // pred_check_branch
      %24 = sbr.rel (0) target = $region25
    $region24: #{qnetwork_forward.1} parent=1 // pred_region
      _
    $region25: #{qnetwork_forward.1} parent=1 // pred_fallthru
      _
    // Predicated region
    $region26: #{qnetwork_forward.1} parent=1 // pred_check
      _
    $region27: #{qnetwork_forward.1} parent=1 // pred_check_branch
      %26 = sbr.rel (0) target = $region29
    $region28: #{qnetwork_forward.1} parent=1 // pred_region
      _
    $region29: #{qnetwork_forward.1} parent=1 // pred_fallthru
      _
    %v27 = vld [vmem:[%s0] sm:$0xff]
    %v28 = vld [vmem:[%s1] sm:$0x3]
    %v29 = vld [vmem:[%s2] sm:$0x1]
    %v31 = vlaneseq
    %v32 = vshrl.u32 %v31, 7
    %v33 = vsub.s32 0, %v32
    %v34 = vrot.slane %v29, %v33
    %vm36 = vcmask 15360
    %v38 = vsel %vm36, %v27, 0
    %vm40 = vcmask 1041408
    %v42 = vsel %vm40, %v28, 0
    %44 = vmatprep.subr.mxu0 0.0
    %45 = vmatpush1.msra.mxu0 0.0
    %46 = vmatprep.subr.mxu0 0.0
    %47 = vmatpush1.msra.mxu0 0.0
    %48 = vmatprep.subr.mxu0 0.0
    %49 = vmatpush1.msra.mxu0 0.0
    %50 = vmatprep.subr.mxu0 0.0
    %51 = vmatpush1.msra.mxu0 0.0
    %52 = vmatprep.subr.mxu0 0.0
    %53 = vmatpush1.msra.mxu0 0.0
    %54 = vmatprep.subr.mxu0 0.0
    %55 = vmatpush1.msra.mxu0 0.0
    %56 = vmatprep.subr.mxu0 0.0
    %57 = vmatpush1.msra.mxu0 0.0
    %58 = vmatprep.subr.mxu0 0.0
    %59 = vmatpush1.msra.mxu0 0.0
    %60 = vmatprep.subr.mxu0 0.0
    %61 = vmatpush1.msra.mxu0 0.0
    %62 = vmatprep.subr.mxu0 0.0
    %63 = vmatpush1.msra.mxu0 0.0
    %64 = vmatprep.subr.mxu0 0.0
    %65 = vmatpush1.msra.mxu0 0.0
    %66 = vmatprep.subr.mxu0 0.0
    %67 = vmatpush1.msra.mxu0 0.0
    %68 = vmatprep.subr.mxu0 0.0
    %69 = vmatpush1.msra.mxu0 0.0
    %70 = vmatprep.subr.mxu0 0.0
    %71 = vmatpush1.msra.mxu0 0.0
    %72 = vmatprep.subr.mxu0 0.0
    %73 = vmatpush1.msra.mxu0 0.0
    %74 = vmatprep.subr.mxu0 0.0
    %75 = vmatpush1.msra.mxu0 %v42
    %76 = vmatprep.subr.mxu0 0.0
    %77 = vmatpush2.msra.mxu0 0.0
    %78 = vmatprep.subr.mxu0 0.0
    %79 = vmatpush2.msra.mxu0 0.0
    %80 = vmatprep.subr.mxu0 0.0
    %81 = vmatpush2.msra.mxu0 0.0
    %82 = vmatprep.subr.mxu0 0.0
    %83 = vmatpush2.msra.mxu0 0.0
    %84 = vmatprep.subr.mxu0 0.0
    %85 = vmatpush2.msra.mxu0 0.0
    %86 = vmatprep.subr.mxu0 0.0
    %87 = vmatpush2.msra.mxu0 0.0
    %88 = vmatprep.subr.mxu0 0.0
    %89 = vmatpush2.msra.mxu0 0.0
    %90 = vmatprep.subr.mxu0 0.0
    %91 = vmatpush2.msra.mxu0 0.0
    %92 = vmatprep.subr.mxu0 0.0
    %93 = vmatpush2.msra.mxu0 0.0
    %94 = vmatprep.subr.mxu0 0.0
    %95 = vmatpush2.msra.mxu0 0.0
    %96 = vmatprep.subr.mxu0 0.0
    %97 = vmatpush2.msra.mxu0 0.0
    %98 = vmatprep.subr.mxu0 0.0
    %99 = vmatpush2.msra.mxu0 0.0
    %100 = vmatprep.subr.mxu0 0.0
    %101 = vmatpush2.msra.mxu0 0.0
    %102 = vmatprep.subr.mxu0 0.0
    %103 = vmatpush2.msra.mxu0 0.0
    %104 = vmatprep.subr.mxu0 0.0
    %105 = vmatpush2.msra.mxu0 0.0
    %106 = vmatprep.subr.mxu0 0.0
    %107 = vmatpush2.msra.mxu0 0.0
    %108 = vmatprep.mubr.f32.mxu0 0.0
    %109 = vmatmul.mubr.f32.gmra.mxu0 %v38
    %v110 = vpop.f32.mrf.mxu0
    %v111 = vadd.f32 %v34, %v110
    %v112 = vpop.f32.mrf.mxu0
    %113 = vdwg.mxu0
    %v114 = vmax.f32 %v111, 0.0
    %v115 = vld [vmem:[%s3] sm:$0xff]
    %v116 = vld [vmem:[%s3 + $0x8] sm:$0xff]
    %v117 = vld [vmem:[%s3 + $0x10] sm:$0xff]
    %v118 = vld [vmem:[%s3 + $0x18] sm:$0xff]
    %v119 = vld [vmem:[%s3 + $0x20] sm:$0xff]
    %v120 = vld [vmem:[%s3 + $0x28] sm:$0xff]
    %v121 = vld [vmem:[%s3 + $0x30] sm:$0xff]
    %v122 = vld [vmem:[%s3 + $0x38] sm:$0xff]
    %v123 = vld [vmem:[%s3 + $0x40] sm:$0xff]
    %v124 = vld [vmem:[%s3 + $0x48] sm:$0xff]
    %v125 = vld [vmem:[%s3 + $0x50] sm:$0xff]
    %v126 = vld [vmem:[%s3 + $0x58] sm:$0xff]
    %v127 = vld [vmem:[%s3 + $0x60] sm:$0xff]
    %v128 = vld [vmem:[%s3 + $0x68] sm:$0xff]
    %v129 = vld [vmem:[%s3 + $0x70] sm:$0xff]
    %v130 = vld [vmem:[%s3 + $0x78] sm:$0xff]
    %v131 = vld [vmem:[%s4] sm:$0x1]
    %v133 = vlaneseq
    %v134 = vshrl.u32 %v133, 7
    %v135 = vsub.s32 0, %v134
    %v136 = vrot.slane %v131, %v135
    %138 = vmatprep.subr.mxu0 0.0
    %139 = vmatpush1.msra.mxu0 %v130
    %140 = vmatprep.subr.mxu0 0.0
    %141 = vmatpush1.msra.mxu0 %v129
    %142 = vmatprep.subr.mxu0 0.0
    %143 = vmatpush1.msra.mxu0 %v128
    %144 = vmatprep.subr.mxu0 0.0
    %145 = vmatpush1.msra.mxu0 %v127
    %146 = vmatprep.subr.mxu0 0.0
    %147 = vmatpush1.msra.mxu0 %v126
    %148 = vmatprep.subr.mxu0 0.0
    %149 = vmatpush1.msra.mxu0 %v125
    %150 = vmatprep.subr.mxu0 0.0
    %151 = vmatpush1.msra.mxu0 %v124
    %152 = vmatprep.subr.mxu0 0.0
    %153 = vmatpush1.msra.mxu0 %v123
    %154 = vmatprep.subr.mxu0 0.0
    %155 = vmatpush1.msra.mxu0 %v122
    %156 = vmatprep.subr.mxu0 0.0
    %157 = vmatpush1.msra.mxu0 %v121
    %158 = vmatprep.subr.mxu0 0.0
    %159 = vmatpush1.msra.mxu0 %v120
    %160 = vmatprep.subr.mxu0 0.0
    %161 = vmatpush1.msra.mxu0 %v119
    %162 = vmatprep.subr.mxu0 0.0
    %163 = vmatpush1.msra.mxu0 %v118
    %164 = vmatprep.subr.mxu0 0.0
    %165 = vmatpush1.msra.mxu0 %v117
    %166 = vmatprep.subr.mxu0 0.0
    %167 = vmatpush1.msra.mxu0 %v116
    %168 = vmatprep.subr.mxu0 0.0
    %169 = vmatpush1.msra.mxu0 %v115
    %170 = vmatprep.subr.mxu0 0.0
    %171 = vmatpush2.msra.mxu0 0.0
    %172 = vmatprep.subr.mxu0 0.0
    %173 = vmatpush2.msra.mxu0 0.0
    %174 = vmatprep.subr.mxu0 0.0
    %175 = vmatpush2.msra.mxu0 0.0
    %176 = vmatprep.subr.mxu0 0.0
    %177 = vmatpush2.msra.mxu0 0.0
    %178 = vmatprep.subr.mxu0 0.0
    %179 = vmatpush2.msra.mxu0 0.0
    %180 = vmatprep.subr.mxu0 0.0
    %181 = vmatpush2.msra.mxu0 0.0
    %182 = vmatprep.subr.mxu0 0.0
    %183 = vmatpush2.msra.mxu0 0.0
    %184 = vmatprep.subr.mxu0 0.0
    %185 = vmatpush2.msra.mxu0 0.0
    %186 = vmatprep.subr.mxu0 0.0
    %187 = vmatpush2.msra.mxu0 0.0
    %188 = vmatprep.subr.mxu0 0.0
    %189 = vmatpush2.msra.mxu0 0.0
    %190 = vmatprep.subr.mxu0 0.0
    %191 = vmatpush2.msra.mxu0 0.0
    %192 = vmatprep.subr.mxu0 0.0
    %193 = vmatpush2.msra.mxu0 0.0
    %194 = vmatprep.subr.mxu0 0.0
    %195 = vmatpush2.msra.mxu0 0.0
    %196 = vmatprep.subr.mxu0 0.0
    %197 = vmatpush2.msra.mxu0 0.0
    %198 = vmatprep.subr.mxu0 0.0
    %199 = vmatpush2.msra.mxu0 0.0
    %200 = vmatprep.subr.mxu0 0.0
    %201 = vmatpush2.msra.mxu0 0.0
    %202 = vmatprep.mubr.f32.mxu0 0.0
    %203 = vmatmul.mubr.f32.gmra.mxu0 %v114
    %v204 = vpop.f32.mrf.mxu0
    %v205 = vadd.f32 %v136, %v204
    %v206 = vpop.f32.mrf.mxu0
    %207 = vdwg.mxu0
    %v208 = vmax.f32 %v205, 0.0
    %v209 = vld [vmem:[%s5] sm:$0xff]
    %v210 = vld [vmem:[%s5 + $0x8] sm:$0xff]
    %v211 = vld [vmem:[%s5 + $0x10] sm:$0xff]
    %v212 = vld [vmem:[%s5 + $0x18] sm:$0xff]
    %v213 = vld [vmem:[%s5 + $0x20] sm:$0xff]
    %v214 = vld [vmem:[%s5 + $0x28] sm:$0xff]
    %v215 = vld [vmem:[%s5 + $0x30] sm:$0xff]
    %v216 = vld [vmem:[%s5 + $0x38] sm:$0xff]
    %v217 = vld [vmem:[%s5 + $0x40] sm:$0xff]
    %v218 = vld [vmem:[%s5 + $0x48] sm:$0xff]
    %v219 = vld [vmem:[%s5 + $0x50] sm:$0xff]
    %v220 = vld [vmem:[%s5 + $0x58] sm:$0xff]
    %v221 = vld [vmem:[%s5 + $0x60] sm:$0xff]
    %v222 = vld [vmem:[%s5 + $0x68] sm:$0xff]
    %v223 = vld [vmem:[%s5 + $0x70] sm:$0xff]
    %v224 = vld [vmem:[%s5 + $0x78] sm:$0xff]
    %v225 = vld [vmem:[%s6] sm:$0x1]
    %v227 = vlaneseq
    %v228 = vshrl.u32 %v227, 7
    %v229 = vsub.s32 0, %v228
    %v230 = vrot.slane %v225, %v229
    %232 = vmatprep.subr.mxu0 0.0
    %233 = vmatpush1.msra.mxu0 %v224
    %234 = vmatprep.subr.mxu0 0.0
    %235 = vmatpush1.msra.mxu0 %v223
    %236 = vmatprep.subr.mxu0 0.0
    %237 = vmatpush1.msra.mxu0 %v222
    %238 = vmatprep.subr.mxu0 0.0
    %239 = vmatpush1.msra.mxu0 %v221
    %240 = vmatprep.subr.mxu0 0.0
    %241 = vmatpush1.msra.mxu0 %v220
    %242 = vmatprep.subr.mxu0 0.0
    %243 = vmatpush1.msra.mxu0 %v219
    %244 = vmatprep.subr.mxu0 0.0
    %245 = vmatpush1.msra.mxu0 %v218
    %246 = vmatprep.subr.mxu0 0.0
    %247 = vmatpush1.msra.mxu0 %v217
    %248 = vmatprep.subr.mxu0 0.0
    %249 = vmatpush1.msra.mxu0 %v216
    %250 = vmatprep.subr.mxu0 0.0
    %251 = vmatpush1.msra.mxu0 %v215
    %252 = vmatprep.subr.mxu0 0.0
    %253 = vmatpush1.msra.mxu0 %v214
    %254 = vmatprep.subr.mxu0 0.0
    %255 = vmatpush1.msra.mxu0 %v213
    %256 = vmatprep.subr.mxu0 0.0
    %257 = vmatpush1.msra.mxu0 %v212
    %258 = vmatprep.subr.mxu0 0.0
    %259 = vmatpush1.msra.mxu0 %v211
    %260 = vmatprep.subr.mxu0 0.0
    %261 = vmatpush1.msra.mxu0 %v210
    %262 = vmatprep.subr.mxu0 0.0
    %263 = vmatpush1.msra.mxu0 %v209
    %264 = vmatprep.subr.mxu0 0.0
    %265 = vmatpush2.msra.mxu0 0.0
    %266 = vmatprep.subr.mxu0 0.0
    %267 = vmatpush2.msra.mxu0 0.0
    %268 = vmatprep.subr.mxu0 0.0
    %269 = vmatpush2.msra.mxu0 0.0
    %270 = vmatprep.subr.mxu0 0.0
    %271 = vmatpush2.msra.mxu0 0.0
    %272 = vmatprep.subr.mxu0 0.0
    %273 = vmatpush2.msra.mxu0 0.0
    %274 = vmatprep.subr.mxu0 0.0
    %275 = vmatpush2.msra.mxu0 0.0
    %276 = vmatprep.subr.mxu0 0.0
    %277 = vmatpush2.msra.mxu0 0.0
    %278 = vmatprep.subr.mxu0 0.0
    %279 = vmatpush2.msra.mxu0 0.0
    %280 = vmatprep.subr.mxu0 0.0
    %281 = vmatpush2.msra.mxu0 0.0
    %282 = vmatprep.subr.mxu0 0.0
    %283 = vmatpush2.msra.mxu0 0.0
    %284 = vmatprep.subr.mxu0 0.0
    %285 = vmatpush2.msra.mxu0 0.0
    %286 = vmatprep.subr.mxu0 0.0
    %287 = vmatpush2.msra.mxu0 0.0
    %288 = vmatprep.subr.mxu0 0.0
    %289 = vmatpush2.msra.mxu0 0.0
    %290 = vmatprep.subr.mxu0 0.0
    %291 = vmatpush2.msra.mxu0 0.0
    %292 = vmatprep.subr.mxu0 0.0
    %293 = vmatpush2.msra.mxu0 0.0
    %294 = vmatprep.subr.mxu0 0.0
    %295 = vmatpush2.msra.mxu0 0.0
    %296 = vmatprep.mubr.f32.mxu0 0.0
    %297 = vmatmul.mubr.f32.gmra.mxu0 %v208
    %v298 = vpop.f32.mrf.mxu0
    %v299 = vadd.f32 %v230, %v298
    %v300 = vpop.f32.mrf.mxu0
    %301 = vdwg.mxu0
    %302 = vst [vmem:[#allocation2] sm:$0xff] %v299
    // Predicated region
    $region30: #{qnetwork_forward.1} parent=1 // pred_check
      _
    $region31: #{qnetwork_forward.1} parent=1 // pred_check_branch
      %304 = sbr.rel (0) target = $region33
    $region32: #{qnetwork_forward.1} parent=1 // pred_region
      %s306 = ssub.s32 128, 32
      %307 = vsyncadd [#allocation3], %s306
      %s308 = sshll.u32 [#allocation2], 4
      %s309 = int_to_ptr.vmem [resolvable:$true] %s308
      %314 = dma.vmem_to_hbm [thread:$0]  %s309, 32, %s7, [#allocation3], 32, 32, 2
    $region33: #{qnetwork_forward.1} parent=1 // pred_fallthru
      _
    // Predicated region
    $region34: #{qnetwork_forward.1} parent=1 // pred_check
      _
    $region35: #{qnetwork_forward.1} parent=1 // pred_check_branch
      %316 = sbr.rel (0) target = $region37
    $region36: #{qnetwork_forward.1} parent=1 // pred_region
      %317 = dma.done [#allocation3], 128
    $region37: #{qnetwork_forward.1} parent=1 // pred_fallthru
      _
    %318 = vsyncpa [#allocation3], 1

</llo_original>
